<compile_context>
chip_gen: v7x
topology: tpu7x:2x2x1
jax: 0.10.0
libtpu: 0.0.40
codegen_flags: <defaults>
</compile_context>

<pallas_src>
import functools
import math

import numpy as np
import jax
import jax.numpy as jnp
from jax.experimental import pallas as pl
from jax.experimental.pallas import tpu as pltpu


# ----------------------------------------------------------------------------------
# Tiling helpers (shared by init-time weight packing and call-time GEMM)
# ----------------------------------------------------------------------------------
def _round_up(x, m):
    return ((x + m - 1) // m) * m


def _m_tiles(M):
    if M <= 256:
        Mp = _round_up(max(M, 1), 8)
        return Mp, Mp
    Mp = _round_up(M, 256)
    return Mp, 256


def _k_tiles(K):
    Kp0 = _round_up(K, 128)
    ks = -(-Kp0 // 4096)                 # number of K steps (tk capped at 4096)
    tk = _round_up(-(-Kp0 // ks), 128)
    return tk * ks, tk


def _n_tiles(N):
    Np0 = _round_up(N, 128)
    if Np0 <= 640:
        return Np0, Np0                  # single N tile (still lane-dense)
    Np = _round_up(N, 256)
    return Np, 256


# ----------------------------------------------------------------------------------
# Pallas GEMM kernel (all convs / linears): bf16 inputs, f32 accumulation in o_ref,
# fused bias (+ optional activation) epilogue.
# ----------------------------------------------------------------------------------
def _mm_kernel(a_ref, b_ref, bias_ref, o_ref, *, act):
    k = pl.program_id(2)

    @pl.when(k == 0)
    def _():
        o_ref[...] = jnp.zeros_like(o_ref)

    o_ref[...] += jnp.dot(a_ref[...], b_ref[...], preferred_element_type=jnp.float32)

    @pl.when(k == pl.num_programs(2) - 1)
    def _():
        r = o_ref[...] + bias_ref[...]
        if act == "silu":
            r = r * jax.nn.sigmoid(r)
        elif act == "relu":
            r = jnp.maximum(r, 0.0)
        o_ref[...] = r


def _gemm(x2d, w, b, n_out, act="none"):
    """x2d: (M, K) float; w: (Kp, Np) bf16 pre-padded; b: (1, Np) f32 -> (M, n_out) f32."""
    M, K = x2d.shape
    Kp, Np = w.shape
    Mp, tm = _m_tiles(M)
    Kp2, tk = _k_tiles(K)
    assert Kp2 == Kp, (K, Kp2, Kp)
    tn = Np if Np <= 640 else 256

    a = x2d.astype(jnp.bfloat16)
    if (Mp, Kp) != (M, K):
        a = jnp.pad(a, ((0, Mp - M), (0, Kp - K)))

    out = pl.pallas_call(
        functools.partial(_mm_kernel, act=act),
        out_shape=jax.ShapeDtypeStruct((Mp, Np), jnp.float32),
        grid_spec=pltpu.PrefetchScalarGridSpec(
            num_scalar_prefetch=0,
            grid=(Mp // tm, Np // tn, Kp // tk),
            in_specs=[
                pl.BlockSpec((tm, tk), lambda i, j, k: (i, k)),
                pl.BlockSpec((tk, tn), lambda i, j, k: (k, j)),
                pl.BlockSpec((1, tn), lambda i, j, k: (0, j)),
            ],
            out_specs=pl.BlockSpec((tm, tn), lambda i, j, k: (i, j)),
        ),
        compiler_params=pltpu.CompilerParams(
            dimension_semantics=("parallel", "parallel", "arbitrary"),
            vmem_limit_bytes=48 * 1024 * 1024,
        ),
    )(a, w, b)

    if (Mp, Np) != (M, n_out):
        out = out[:M, :n_out]
    return out


@functools.partial(jax.jit, static_argnames=("n", "act"))
def _linear_cl(x2d, w, b, n, act):
    return _gemm(x2d, w, b, n, act)


def _patches_cl(x, k, stride):
    """channels-last im2col: x (N, F, H, W, C) -> (N*Fo*Ho*Wo, k^3*C), tap-major/C-minor."""
    N, F, H, W, C = x.shape
    sf, sh, sw = stride
    p = k // 2
    xp = jnp.pad(x, ((0, 0), (p, p), (p, p), (p, p), (0, 0)))
    Fo = (F + 2 * p - k) // sf + 1
    Ho = (H + 2 * p - k) // sh + 1
    Wo = (W + 2 * p - k) // sw + 1
    cols = []
    for i in range(k):
        for j in range(k):
            for l in range(k):
                cols.append(xp[:, i:i + sf * Fo:sf, j:j + sh * Ho:sh, l:l + sw * Wo:sw, :])
    col = jnp.concatenate(cols, axis=-1)
    return col.reshape(N * Fo * Ho * Wo, k * k * k * C), (Fo, Ho, Wo)


@functools.partial(jax.jit, static_argnames=("k", "n", "stride"))
def _conv_cl(x, w, b, k, n, stride):
    """x: (N, F, H, W, Cin) f32 channels-last -> (N, Fo, Ho, Wo, Cout) f32."""
    N = x.shape[0]
    xb = x.astype(jnp.bfloat16)          # halve im2col + A-operand traffic
    if k == 1 and stride == (1, 1, 1):
        Fo, Ho, Wo = x.shape[1], x.shape[2], x.shape[3]
        col = xb.reshape(-1, x.shape[-1])
    else:
        col, (Fo, Ho, Wo) = _patches_cl(xb, k, stride)
    y = _gemm(col, w, b, n, "none")
    return y.reshape(N, Fo, Ho, Wo, n)


def dense(p, x2d, act="none"):
    return _linear_cl(x2d, p["w"], p["b"], n=p["n"], act=act)


def conv3d(p, x, stride=(1, 1, 1)):
    return _conv_cl(x, p["w"], p["b"], k=p["k"], n=p["n"], stride=stride)


# ----------------------------------------------------------------------------------
# Fused GroupNorm Pallas kernel (channels-last): stats + affine (+scale-shift folded
# outside) + optional SiLU in one pass.  Group reduction via a tiny one-hot matmul.
# ----------------------------------------------------------------------------------
def _gn_kernel(x_ref, a_ref, at_ref, w_ref, b_ref, f_ref, o_ref, *, inv_count, eps):
    x = x_ref[0]                                          # (S, C) f32
    a = a_ref[...]                                        # (C, G)
    at = at_ref[...]                                      # (G, C)
    s1 = jnp.sum(x, axis=0, keepdims=True)                # (1, C)
    s2 = jnp.sum(x * x, axis=0, keepdims=True)            # (1, C)
    g1 = jnp.dot(s1, a, preferred_element_type=jnp.float32) * inv_count   # (1, G)
    g2 = jnp.dot(s2, a, preferred_element_type=jnp.float32) * inv_count
    rstd = jax.lax.rsqrt(jnp.maximum(g2 - g1 * g1, 0.0) + eps)
    mean_c = jnp.dot(g1, at, preferred_element_type=jnp.float32)          # (1, C)
    rstd_c = jnp.dot(rstd, at, preferred_element_type=jnp.float32)
    y = (x - mean_c) * rstd_c * w_ref[0] + b_ref[0]
    flags = f_ref[...]                                    # (1, 1): 1.0 -> fused SiLU
    o_ref[0] = y * (flags * jax.nn.sigmoid(y) + (1.0 - flags))


@functools.partial(jax.jit, static_argnames=("groups",))
def _gn_call(x3, w3, b3, flag, groups):
    N, S, C = x3.shape
    cg = C // groups
    ch = jnp.arange(C, dtype=jnp.int32)
    a = (ch[:, None] // cg == jnp.arange(groups, dtype=jnp.int32)[None, :]).astype(jnp.float32)
    at = a.T
    kern = functools.partial(_gn_kernel, inv_count=1.0 / float(S * cg), eps=1e-5)
    # TODO(synk): at production feature-map sizes S needs tiling (two-pass stats).
    return pl.pallas_call(
        kern,
        out_shape=jax.ShapeDtypeStruct((N, S, C), jnp.float32),
        grid_spec=pltpu.PrefetchScalarGridSpec(
            num_scalar_prefetch=0,
            grid=(N,),
            in_specs=[
                pl.BlockSpec((1, S, C), lambda n: (n, 0, 0)),
                pl.BlockSpec((C, groups), lambda n: (0, 0)),
                pl.BlockSpec((groups, C), lambda n: (0, 0)),
                pl.BlockSpec((1, 1, C), lambda n: (n, 0, 0)),
                pl.BlockSpec((1, 1, C), lambda n: (n, 0, 0)),
                pl.BlockSpec((1, 1), lambda n: (0, 0)),
            ],
            out_specs=pl.BlockSpec((1, S, C), lambda n: (n, 0, 0)),
        ),
        compiler_params=pltpu.CompilerParams(
            dimension_semantics=("parallel",),
            vmem_limit_bytes=48 * 1024 * 1024,
        ),
    )(x3, a, at, w3, b3, flag)


def group_norm(p, x, act_silu=False, scale=None, shift=None, groups=32):
    """GroupNorm32 on channels-last x; gamma/beta, scale-shift and SiLU fused in-kernel."""
    shp = x.shape
    N, C = shp[0], shp[-1]
    x3 = x.reshape(N, -1, C)
    if scale is None:
        w = jnp.broadcast_to(p["g"], (N, C))
        b = jnp.broadcast_to(p["b"], (N, C))
    else:                                # (gn(x)*g+b)*(1+scale)+shift  folded into affine
        w = p["g"][None, :] * (1.0 + scale)
        b = p["b"][None, :] * (1.0 + scale) + shift
    flag = jnp.full((1, 1), 1.0 if act_silu else 0.0, jnp.float32)
    y = _gn_call(x3, w[:, None, :], b[:, None, :], flag, groups=groups)
    return y.reshape(shp)


# ----------------------------------------------------------------------------------
# Misc glue
# ----------------------------------------------------------------------------------
def silu(x):
    return x * jax.nn.sigmoid(x)


def _upsample_hw(x):                      # (N, F, H, W, C): dims=3 -> only H, W doubled
    x = jnp.repeat(x, 2, axis=2)
    return jnp.repeat(x, 2, axis=3)


def timestep_embedding(t, dim, max_period=10000):
    half = dim // 2
    freqs = jnp.exp(-math.log(max_period) * jnp.arange(half, dtype=jnp.float32) / half)
    args = t.astype(jnp.float32)[:, None] * freqs[None, :]
    return jnp.concatenate([jnp.cos(args), jnp.sin(args)], axis=-1)


# ----------------------------------------------------------------------------------
# Parameters (deterministic NumPy init; weights pre-reshaped/padded/bf16 at build time)
# ----------------------------------------------------------------------------------
class Init:
    def __init__(self, seed=0):
        self.rng = np.random.default_rng(seed)

    def normal(self, shape, scale):
        return self.rng.standard_normal(shape, dtype=np.float32) * np.float32(scale)


def _pack_weight(wk, cout):
    K = wk.shape[0]
    Kp, _ = _k_tiles(K)
    Np, _ = _n_tiles(cout)
    wp = np.zeros((Kp, Np), np.float32)
    wp[:K, :cout] = wk
    return {"w": jnp.asarray(wp, dtype=jnp.bfloat16),
            "b": jnp.zeros((1, Np), jnp.float32),
            "n": cout}


def make_conv(init, cin, cout, k):
    # A real checkpoint (cout, cin, k, k, k) would be transposed to this tap-major,
    # channel-minor (k^3*cin, cout) GEMM layout once at load time.
    K = cin * k ** 3
    p = _pack_weight(init.normal((K, cout), 1.0 / math.sqrt(K)), cout)
    p["k"] = k
    return p


def make_linear(init, din, dout):
    return _pack_weight(init.normal((din, dout), 1.0 / math.sqrt(din)), dout)


def make_gn(c):
    return {"g": jnp.ones((c,), jnp.float32), "b": jnp.zeros((c,), jnp.float32)}


def make_resblock(init, cin, cout, emb_dim):
    p = {"gn1": make_gn(cin),
         "conv1": make_conv(init, cin, cout, 3),
         "emb": make_linear(init, emb_dim, 2 * cout),      # use_scale_shift_norm=True
         "gn2": make_gn(cout),
         "conv2": make_conv(init, cout, cout, 3)}          # TODO(synk): zero_module in original
    if cin != cout:
        p["skip"] = make_conv(init, cin, cout, 1)
    return p


def make_attention(init, c, nheads, enc_c=None):
    p = {"gn": make_gn(c),
         "qkv": make_linear(init, c, 3 * c),
         "proj": make_linear(init, c, c),                  # TODO(synk): zero_module in original
         "nheads": nheads}
    if enc_c is not None:
        p["enc_kv"] = make_linear(init, enc_c, 2 * c)
    return p


def make_unet_params(init, *, in_channels, model_channels, out_channels,
                     num_res_blocks, attention_resolutions, channel_mult,
                     num_head_channels, encoder_channels):
    ted = model_channels * 4
    p = {"model_channels": model_channels}
    p["time_embed"] = [make_linear(init, model_channels, ted),
                       make_linear(init, ted, ted)]
    input_blocks = [[("conv", make_conv(init, in_channels, model_channels, 3))]]
    ch = model_channels
    chans = [ch]
    ds = 1
    for level, mult in enumerate(channel_mult):
        for _ in range(num_res_blocks):
            layers = [("res", make_resblock(init, ch, mult * model_channels, ted))]
            ch = mult * model_channels
            if ds in attention_resolutions:
                layers.append(("attn", make_attention(init, ch, ch // num_head_channels,
                                                      encoder_channels)))
            input_blocks.append(layers)
            chans.append(ch)
        if level != len(channel_mult) - 1:
            input_blocks.append([("down", make_conv(init, ch, ch, 3))])
            chans.append(ch)
            ds *= 2
    p["input_blocks"] = input_blocks
    p["middle"] = [("res", make_resblock(init, ch, ch, ted)),
                   ("attn", make_attention(init, ch, ch // num_head_channels, encoder_channels)),
                   ("res", make_resblock(init, ch, ch, ted))]
    output_blocks = []
    for level, mult in list(enumerate(channel_mult))[::-1]:
        for i in range(num_res_blocks + 1):
            ich = chans.pop()
            layers = [("res", make_resblock(init, ch + ich, mult * model_channels, ted))]
            ch = mult * model_channels
            if ds in attention_resolutions:
                layers.append(("attn", make_attention(init, ch, ch // num_head_channels,
                                                      encoder_channels)))
            if level and i == num_res_blocks:
                layers.append(("up", make_conv(init, ch, ch, 3)))
                ds //= 2
            output_blocks.append(layers)
    p["output_blocks"] = output_blocks
    p["out_gn"] = make_gn(ch)
    p["out_conv"] = make_conv(init, ch, out_channels, 3)   # TODO(synk): zero_module in original
    return p


def make_encoder_unet_params(init, *, in_channels, model_channels, out_channels,
                             num_res_blocks, channel_mult):
    ted = model_channels * 4
    p = {"model_channels": model_channels}
    p["time_embed"] = [make_linear(init, model_channels, ted),
                       make_linear(init, ted, ted)]
    input_blocks = [[("conv", make_conv(init, in_channels, model_channels, 3))]]
    ch = model_channels
    feat = ch
    for level, mult in enumerate(channel_mult):
        for _ in range(num_res_blocks):
            input_blocks.append([("res", make_resblock(init, ch, mult * model_channels, ted))])
            ch = mult * model_channels
            feat += ch
        if level != len(channel_mult) - 1:
            input_blocks.append([("down", make_conv(init, ch, ch, 3))])
            feat += ch
    p["input_blocks"] = input_blocks
    p["middle"] = [("res", make_resblock(init, ch, ch, ted)),
                   ("attn", make_attention(init, ch, 1, None)),
                   ("res", make_resblock(init, ch, ch, ted))]
    feat += ch
    p["out"] = [make_linear(init, feat, 2048), make_linear(init, 2048, out_channels)]
    return p


def make_unet_mw_supp_params(seed=0):
    init = Init(seed)
    return {
        "unet": make_unet_params(
            init, in_channels=6, model_channels=128, out_channels=3,
            num_res_blocks=2, attention_resolutions=(8, 16),
            channel_mult=(1, 2, 3, 4, 5), num_head_channels=32,
            encoder_channels=512),
        "video_encoder": make_encoder_unet_params(
            init, in_channels=3, model_channels=32, out_channels=512,
            num_res_blocks=1, channel_mult=(1, 2, 4)),
    }


# ----------------------------------------------------------------------------------
# Forward passes (activations channels-last: N, F, H, W, C)
# ----------------------------------------------------------------------------------
def resblock(p, x, emb):
    h = group_norm(p["gn1"], x, act_silu=True)                 # GN + SiLU fused
    h = conv3d(p["conv1"], h)
    emb_out = dense(p["emb"], silu(emb))                       # (N, 2*Cout)
    scale, shift = jnp.split(emb_out, 2, axis=-1)
    h = group_norm(p["gn2"], h, act_silu=True, scale=scale, shift=shift)   # scale-shift + SiLU fused
    h = conv3d(p["conv2"], h)                                  # dropout=0 -> identity
    skip = conv3d(p["skip"], x) if "skip" in p else x
    return skip + h


def attention_block(p, x, enc_tokens):
    shp = x.shape
    N, C = shp[0], shp[-1]
    T = int(np.prod(shp[1:-1]))
    Hh = p["nheads"]
    d = C // Hh
    xt = x.reshape(N, T, C)
    h = group_norm(p["gn"], xt, act_silu=False)
    qkv = dense(p["qkv"], h.reshape(N * T, C)).reshape(N, T, Hh, 3, d)
    q, k, v = qkv[..., 0, :], qkv[..., 1, :], qkv[..., 2, :]
    if enc_tokens is not None and "enc_kv" in p:
        Te = enc_tokens.shape[1]
        ekv = dense(p["enc_kv"], enc_tokens.reshape(-1, enc_tokens.shape[-1]))
        ekv = ekv.reshape(N, Te, Hh, 2, d)
        k = jnp.concatenate([ekv[..., 0, :], k], axis=1)
        v = jnp.concatenate([ekv[..., 1, :], v], axis=1)
    scale = 1.0 / math.sqrt(math.sqrt(d))
    w = jnp.einsum("nthd,nshd->nhts", q * scale, k * scale)    # tiny here; TODO(synk): flash kernel
    w = jax.nn.softmax(w, axis=-1)
    a = jnp.einsum("nhts,nshd->nthd", w, v).reshape(N, T, C)
    out = dense(p["proj"], a.reshape(N * T, C)).reshape(N, T, C)
    return (xt + out).reshape(shp)


def apply_layers(layers, h, emb, enc):
    for kind, lp in layers:
        if kind == "conv":
            h = conv3d(lp, h)
        elif kind == "res":
            h = resblock(lp, h, emb)
        elif kind == "attn":
            h = attention_block(lp, h, enc)
        elif kind == "down":
            h = conv3d(lp, h, stride=(1, 2, 2))                # dims=3: only H, W downsampled
        elif kind == "up":
            h = conv3d(lp, _upsample_hw(h))                    # dims=3: only H, W upsampled
    return h


def unet_forward(p, x_cl, t, task_tokens):
    mc = p["model_channels"]
    emb = timestep_embedding(t, mc)
    emb = dense(p["time_embed"][0], emb, act="silu")           # SiLU fused in epilogue
    emb = dense(p["time_embed"][1], emb)
    # TODO(synk): exact AVDC task-token conditioning path is unavailable; task tokens are
    # consumed as cross-attention encoder_kv at every attention block.
    enc = task_tokens                                          # (B, Ttok, 512) tokens-last
    hs = []
    h = x_cl.astype(jnp.float32)
    for layers in p["input_blocks"]:
        h = apply_layers(layers, h, emb, enc)
        hs.append(h)
    h = apply_layers(p["middle"], h, emb, enc)
    for layers in p["output_blocks"]:
        h = jnp.concatenate([h, hs.pop()], axis=-1)
        h = apply_layers(layers, h, emb, enc)
    h = group_norm(p["out_gn"], h, act_silu=True)
    return conv3d(p["out_conv"], h)


def encoder_unet_forward(p, x_cl, t):
    mc = p["model_channels"]
    emb = timestep_embedding(t, mc)
    emb = dense(p["time_embed"][0], emb, act="silu")
    emb = dense(p["time_embed"][1], emb)
    results = []
    h = x_cl.astype(jnp.float32)
    for layers in p["input_blocks"]:
        h = apply_layers(layers, h, emb, None)
        # TODO(synk): guided-diffusion 'spatial' pool hard-codes mean(dim=(2,3)); for dims=3
        # we pool over all spatial dims.
        results.append(jnp.mean(h, axis=(1, 2, 3)))
    h = apply_layers(p["middle"], h, emb, None)
    results.append(jnp.mean(h, axis=(1, 2, 3)))
    h = jnp.concatenate(results, axis=-1)
    h = dense(p["out"][0], h, act="relu")                      # ReLU fused in epilogue
    return dense(p["out"][1], h)


def video_encoder_forward(p, xs):
    b, n, c, f, h, w = xs.shape
    x = xs.reshape(b * n, c, f, h, w).transpose(0, 2, 3, 4, 1)  # channels-last
    t = jnp.zeros((b * n,), jnp.int32)
    out = encoder_unet_forward(p, x, t)                         # (b*n, 512)
    return jnp.mean(out.reshape(b, n, -1), axis=1)              # (b, 512)


def unet_mw_supp_forward(params, x, t, task_embed=None, supp=None):
    b, ctot, h, w = x.shape
    f = ctot // 3 - 1
    x_cond = jnp.repeat(x[:, -3:, None, :, :], f, axis=2)                 # b 3 f h w
    x_main = x[:, :-3].reshape(b, f, 3, h, w).transpose(0, 2, 1, 3, 4)    # b 3 f h w
    x5 = jnp.concatenate([x_main, x_cond], axis=1)                        # b 6 f h w
    x_cl = jnp.transpose(x5, (0, 2, 3, 4, 1))                             # channels-last once
    if supp is not None:                                                  # mirrors `supp[0] is not None`
        supp_feat = video_encoder_forward(params["video_encoder"], supp)
        task_embed = jnp.concatenate([task_embed, supp_feat[:, None, :]], axis=1)
    out_cl = unet_forward(params["unet"], x_cl, t, task_embed)            # b f h w 3
    return jnp.transpose(out_cl, (0, 1, 4, 2, 3)).reshape(b, f * 3, h, w)  # b (f c) h w


# ----------------------------------------------------------------------------------
if __name__ == "__main__":
    key = jax.random.PRNGKey(0)
    kx, kt, ke, ks = jax.random.split(key, 4)

    B, F_frames, Hs, Ws = 1, 2, 16, 16   # small spatial so the 4 downsamples still halve exactly
    x = jax.random.normal(kx, (B, 3 * (F_frames + 1), Hs, Ws), jnp.float32)
    t = jax.random.randint(kt, (B,), 0, 1000)
    task_embed = jax.random.normal(ke, (B, 2, 512), jnp.float32)
    supp = jax.random.normal(ks, (B, 1, 3, F_frames, Hs, Ws), jnp.float32)

    params = make_unet_mw_supp_params(seed=0)

    out = unet_mw_supp_forward(params, x, t, task_embed=task_embed, supp=supp)
    out = jax.block_until_ready(out)
    assert out.shape == (B, 3 * F_frames, Hs, Ws), out.shape
    assert bool(jnp.all(jnp.isfinite(out)))
    print("KERNEL_OK")
</pallas_src>

<mosaic_0001>
module attributes {stable_mosaic.version = 11 : i64} {
  func.func @_mm_kernel(%arg0: i32, %arg1: i32, %arg2: i32, %arg3: memref<8x128xbf16, #tpu.memory_space<vmem>>, %arg4: memref<128x128xbf16, #tpu.memory_space<vmem>>, %arg5: memref<1x128xf32, #tpu.memory_space<vmem>>, %arg6: memref<8x128xf32, #tpu.memory_space<vmem>>) attributes {dimension_semantics = [#tpu.dimension_semantics<parallel>, #tpu.dimension_semantics<parallel>, #tpu.dimension_semantics<arbitrary>], iteration_bounds = array<i64: 1, 1, 1>, scalar_prefetch = 0 : i64, scratch_operands = 0 : i64, tpu.core_type = #tpu.core_type<tc>, window_params = [{transform_indices = @transform_0, window_bounds = array<i64: 8, 128>}, {transform_indices = @transform_1, window_bounds = array<i64: 128, 128>}, {transform_indices = @transform_2, window_bounds = array<i64: 1, 128>}, {transform_indices = @transform_3, window_bounds = array<i64: 8, 128>}]} {
    %c0_i32 = arith.constant 0 : i32
    %0 = arith.cmpi eq, %arg2, %c0_i32 : i32
    %1 = arith.extui %0 : i1 to i32
    %c0_i32_0 = arith.constant 0 : i32
    %2 = arith.cmpi ne, %1, %c0_i32_0 : i32
    scf.if %2 {
      %cst_10 = arith.constant 0.000000e+00 : f32
      %12 = vector.broadcast %cst_10 : f32 to vector<8x128xf32>
      %c0_11 = arith.constant 0 : index
      %c0_12 = arith.constant 0 : index
      %13 = vector.load %arg6[%c0_11, %c0_12] : memref<8x128xf32, #tpu.memory_space<vmem>>, vector<8x128xf32>
      tpu.vector_store %arg6[%c0_11, %c0_12], %12 {strides = array<i32>} : memref<8x128xf32, #tpu.memory_space<vmem>>, vector<8x128xf32>,
    } else {
    }
    %c0 = arith.constant 0 : index
    %c0_1 = arith.constant 0 : index
    %3 = vector.load %arg6[%c0, %c0_1] : memref<8x128xf32, #tpu.memory_space<vmem>>, vector<8x128xf32>
    %c0_2 = arith.constant 0 : index
    %c0_3 = arith.constant 0 : index
    %4 = vector.load %arg3[%c0_2, %c0_3] : memref<8x128xbf16, #tpu.memory_space<vmem>>, vector<8x128xbf16>
    %c0_4 = arith.constant 0 : index
    %c0_5 = arith.constant 0 : index
    %5 = vector.load %arg4[%c0_4, %c0_5] : memref<128x128xbf16, #tpu.memory_space<vmem>>, vector<128x128xbf16>
    %cst = arith.constant dense<0.000000e+00> : vector<8x128xf32>
    %6 = tpu.matmul %4, %5, %cst {dimension_numbers = #tpu.dot_dimension_numbers<[1], [0], [0], [1], [0, 0, 1, 1], [], []>} : vector<8x128xbf16>, vector<128x128xbf16>, vector<8x128xf32> -> vector<8x128xf32>
    %7 = arith.addf %3, %6 : vector<8x128xf32>
    %c0_6 = arith.constant 0 : index
    %c0_7 = arith.constant 0 : index
    %8 = vector.load %arg6[%c0_6, %c0_7] : memref<8x128xf32, #tpu.memory_space<vmem>>, vector<8x128xf32>
    tpu.vector_store %arg6[%c0_6, %c0_7], %7 {strides = array<i32>} : memref<8x128xf32, #tpu.memory_space<vmem>>, vector<8x128xf32>,
    %c0_i32_8 = arith.constant 0 : i32
    %9 = arith.cmpi eq, %arg2, %c0_i32_8 : i32
    %10 = arith.extui %9 : i1 to i32
    %c0_i32_9 = arith.constant 0 : i32
    %11 = arith.cmpi ne, %10, %c0_i32_9 : i32
    scf.if %11 {
      %c0_10 = arith.constant 0 : index
      %c0_11 = arith.constant 0 : index
      %12 = vector.load %arg6[%c0_10, %c0_11] : memref<8x128xf32, #tpu.memory_space<vmem>>, vector<8x128xf32>
      %c0_12 = arith.constant 0 : index
      %c0_13 = arith.constant 0 : index
      %13 = vector.load %arg5[%c0_12, %c0_13] : memref<1x128xf32, #tpu.memory_space<vmem>>, vector<1x128xf32>
      %14 = vector.broadcast %13 : vector<1x128xf32> to vector<8x128xf32>
      %15 = arith.addf %12, %14 : vector<8x128xf32>
      %16 = arith.negf %15 : vector<8x128xf32>
      %17 = math.exp %16 : vector<8x128xf32>
      %cst_14 = arith.constant 1.000000e+00 : f32
      %18 = vector.broadcast %cst_14 : f32 to vector<8x128xf32>
      %19 = arith.addf %18, %17 : vector<8x128xf32>
      %20 = arith.divf %18, %19 : vector<8x128xf32>
      %21 = arith.mulf %15, %20 : vector<8x128xf32>
      %c0_15 = arith.constant 0 : index
      %c0_16 = arith.constant 0 : index
      %22 = vector.load %arg6[%c0_15, %c0_16] : memref<8x128xf32, #tpu.memory_space<vmem>>, vector<8x128xf32>
      tpu.vector_store %arg6[%c0_15, %c0_16], %21 {strides = array<i32>} : memref<8x128xf32, #tpu.memory_space<vmem>>, vector<8x128xf32>,
    } else {
    }
    return
  }
  func.func @transform_0(%arg0: i32, %arg1: i32, %arg2: i32) -> (i32, i32) {
    %c0_i32 = arith.constant 0 : i32
    return %arg0, %arg2 : i32, i32
  }
  func.func @transform_1(%arg0: i32, %arg1: i32, %arg2: i32) -> (i32, i32) {
    %c0_i32 = arith.constant 0 : i32
    return %arg2, %arg1 : i32, i32
  }
  func.func @transform_2(%arg0: i32, %arg1: i32, %arg2: i32) -> (i32, i32) {
    %c0_i32 = arith.constant 0 : i32
    %c0_i32_0 = arith.constant 0 : i32
    return %c0_i32, %arg1 : i32, i32
  }
  func.func @transform_3(%arg0: i32, %arg1: i32, %arg2: i32) -> (i32, i32) {
    %c0_i32 = arith.constant 0 : i32
    return %arg0, %arg1 : i32, i32
  }
}

</mosaic_0001>

<llo_original>
// kernel: _linear_cl.1
$region0: #{_linear_cl.1}
  #allocation0 [shape = 'u32[]', space=smem, size = 0x4, offset = 0x4, fixed_abs, tag = 'smem constant byte address 0x4 - core index']
  #allocation1 [shape = 'u32[144,128]{1,0:T(1,128)}', space=vmem, size = 0x12000, scoped, tag = 'internal scratch']
  %s0 = inlined_call_operand.vmem [shape: bf16[8,128], index: 0, kind: input, shape index: {}]
  %s1 = inlined_call_operand.hbm [shape: bf16[128,128], index: 1, kind: input, shape index: {}]
  %s2 = inlined_call_operand.vmem [shape: f32[1,128], index: 2, kind: input, shape index: {}]
  %s3 = inlined_call_operand.vmem [shape: f32[8,128], index: 3, kind: output, shape index: {}]
  %s4 = sld [smem:[#allocation0]]
  $region34: #{_linear_cl.1} parent=0
    _
  %s6 = ssub.s32 1, %s4
  %s7 = scalar_select 0, %s6, %s4
  $region1: #{_linear_cl.1} parent=0
    #allocation2 [shape = 'u8[32768]{0}', space=vmem, size = 0x8000, scoped, tag = 'input window, operand 1, single buffered']
    #allocation3 [shape = 's32[1]{0}', space=sflag, size = 0x4, scoped, tag = 'scoped memory for _linear_cl.1']
    %8 = vsyncpa [#allocation3], 0
    // Predicated region
    $region2: #{_linear_cl.1} parent=1 // pred_check
      _
    $region3: #{_linear_cl.1} parent=1 // pred_check_branch
      %10 = sbr.rel (0) target = $region5
    $region4: #{_linear_cl.1} parent=1 // pred_region
      _
    $region5: #{_linear_cl.1} parent=1 // pred_fallthru
      _
    // Predicated region
    $region6: #{_linear_cl.1} parent=1 // pred_check
      _
    $region7: #{_linear_cl.1} parent=1 // pred_check_branch
      %12 = sbr.rel (0) target = $region9
    $region8: #{_linear_cl.1} parent=1 // pred_region
      %s14 = ssub.s32 1024, 1024
      %15 = vsyncadd [#allocation3], %s14
      %s16 = sshll.u32 [#allocation2], 4
      %s17 = int_to_ptr.vmem [resolvable:$true] %s16
      %22 = dma.hbm_to_vmem [thread:$0]  %s1, 1024, %s17, [#allocation3], 64, 64, 4
    $region9: #{_linear_cl.1} parent=1 // pred_fallthru
      _
    // Predicated region
    $region10: #{_linear_cl.1} parent=1 // pred_check
      _
    $region11: #{_linear_cl.1} parent=1 // pred_check_branch
      %24 = sbr.rel (0) target = $region13
    $region12: #{_linear_cl.1} parent=1 // pred_region
      _
    $region13: #{_linear_cl.1} parent=1 // pred_fallthru
      _
    // Predicated region
    $region14: #{_linear_cl.1} parent=1 // pred_check
      _
    $region15: #{_linear_cl.1} parent=1 // pred_check_branch
      %26 = sbr.rel (0) target = $region17
    $region16: #{_linear_cl.1} parent=1 // pred_region
      %27 = dma.done [#allocation3], 1024
    $region17: #{_linear_cl.1} parent=1 // pred_fallthru
      _
    %p29 = scmp.eq.s32.totalorder 0, 0
    // Predicated region
    $region18: #{_linear_cl.1} parent=1 // pred_check
      %p30 = pneg %p29
    $region19: #{_linear_cl.1} parent=1 // pred_check_branch
      %32 = sbr.rel (%p30) target = $region21
    $region20: #{_linear_cl.1} parent=1 // pred_region
      %33 = vst [vmem:[%s3] sm:$0xff] 0.0
    $region21: #{_linear_cl.1} parent=1 // pred_fallthru
      _
    %v34 = vld [vmem:[%s3] sm:$0xff]
    %v35 = vld [vmem:[%s0] sm:$0xf]
    %v36 = vld [vmem:[#allocation2] sm:$0xf]
    %v37 = vld [vmem:[#allocation2 + $0x4] sm:$0xf]
    %v38 = vld [vmem:[#allocation2 + $0x8] sm:$0xf]
    %v39 = vld [vmem:[#allocation2 + $0xc] sm:$0xf]
    %v40 = vld [vmem:[#allocation2 + $0x10] sm:$0xf]
    %v41 = vld [vmem:[#allocation2 + $0x14] sm:$0xf]
    %v42 = vld [vmem:[#allocation2 + $0x18] sm:$0xf]
    %v43 = vld [vmem:[#allocation2 + $0x1c] sm:$0xf]
    %v44 = vld [vmem:[#allocation2 + $0x20] sm:$0xf]
    %v45 = vld [vmem:[#allocation2 + $0x24] sm:$0xf]
    %v46 = vld [vmem:[#allocation2 + $0x28] sm:$0xf]
    %v47 = vld [vmem:[#allocation2 + $0x2c] sm:$0xf]
    %v48 = vld [vmem:[#allocation2 + $0x30] sm:$0xf]
    %v49 = vld [vmem:[#allocation2 + $0x34] sm:$0xf]
    %v50 = vld [vmem:[#allocation2 + $0x38] sm:$0xf]
    %v51 = vld [vmem:[#allocation2 + $0x3c] sm:$0xf]
    %v68 = vunpack.c.l.b16 %v36
    %v69 = vunpack.c.l.b16 %v37
    %v70 = vunpack.c.l.b16 %v38
    %v71 = vunpack.c.l.b16 %v39
    %v72 = vunpack.c.l.b16 %v40
    %v73 = vunpack.c.l.b16 %v41
    %v74 = vunpack.c.l.b16 %v42
    %v75 = vunpack.c.l.b16 %v43
    %v76 = vunpack.c.l.b16 %v44
    %v77 = vunpack.c.l.b16 %v45
    %v78 = vunpack.c.l.b16 %v46
    %v79 = vunpack.c.l.b16 %v47
    %v80 = vunpack.c.l.b16 %v48
    %v81 = vunpack.c.l.b16 %v49
    %v82 = vunpack.c.l.b16 %v50
    %v83 = vunpack.c.l.b16 %v51
    %v84 = vpack.c.b16 %v69, %v68
    %v85 = vpack.c.b16 %v71, %v70
    %v86 = vpack.c.b16 %v73, %v72
    %v87 = vpack.c.b16 %v75, %v74
    %v88 = vpack.c.b16 %v77, %v76
    %v89 = vpack.c.b16 %v79, %v78
    %v90 = vpack.c.b16 %v81, %v80
    %v91 = vpack.c.b16 %v83, %v82
    %100 = vmatprep.subr.bf16.mxu0 0
    %101 = vmatpush1.bf16.msra.mxu0 %v84
    %102 = vmatprep.subr.bf16.mxu0 0
    %103 = vmatpush1.bf16.msra.mxu0 %v85
    %104 = vmatprep.subr.bf16.mxu0 0
    %105 = vmatpush1.bf16.msra.mxu0 %v86
    %106 = vmatprep.subr.bf16.mxu0 0
    %107 = vmatpush1.bf16.msra.mxu0 %v87
    %108 = vmatprep.subr.bf16.mxu0 0
    %109 = vmatpush1.bf16.msra.mxu0 %v88
    %110 = vmatprep.subr.bf16.mxu0 0
    %111 = vmatpush1.bf16.msra.mxu0 %v89
    %112 = vmatprep.subr.bf16.mxu0 0
    %113 = vmatpush1.bf16.msra.mxu0 %v90
    %114 = vmatprep.subr.bf16.mxu0 0
    %115 = vmatpush1.bf16.msra.mxu0 %v91
    %116 = vmatprep.subr.bf16.mxu0 0
    %117 = vmatpush1.bf16.msra.mxu0 0
    %118 = vmatprep.subr.bf16.mxu0 0
    %119 = vmatpush1.bf16.msra.mxu0 0
    %120 = vmatprep.subr.bf16.mxu0 0
    %121 = vmatpush1.bf16.msra.mxu0 0
    %122 = vmatprep.subr.bf16.mxu0 0
    %123 = vmatpush1.bf16.msra.mxu0 0
    %124 = vmatprep.subr.bf16.mxu0 0
    %125 = vmatpush1.bf16.msra.mxu0 0
    %126 = vmatprep.subr.bf16.mxu0 0
    %127 = vmatpush1.bf16.msra.mxu0 0
    %128 = vmatprep.subr.bf16.mxu0 0
    %129 = vmatpush1.bf16.msra.mxu0 0
    %130 = vmatprep.subr.bf16.mxu0 0
    %131 = vmatpush1.bf16.msra.mxu0 0
    %132 = vmatprep.mubr.bf16.mxu0 0
    %133 = vmatmul.mubr.bf16.gmra.mrb[0].mxu0 %v35
    %v134 = vpop.f32.mrb[0].mxu0
    %v135 = vadd.f32 0.0, %v134
    %v136 = vpop.f32.mrb[0].mxu0
    %v137 = vpop.f32.mrb[0].mxu0
    %v138 = vpop.f32.mrb[0].mxu0
    %139 = vdwg.mxu0
    %v140 = vadd.f32 %v34, %v135
    %141 = vst [vmem:[%s3] sm:$0xff] %v140
    // Predicated region
    $region22: #{_linear_cl.1} parent=1 // pred_check
      %p142 = pneg %p29
    $region23: #{_linear_cl.1} parent=1 // pred_check_branch
      %144 = sbr.rel (%p142) target = $region25
    $region24: #{_linear_cl.1} parent=1 // pred_region
      %v145 = vld [vmem:[%s3] sm:$0xff]
      %v146 = vld [vmem:[%s2] sm:$0x1]
      %v148 = vlaneseq
      %v149 = vshrl.u32 %v148, 7
      %v150 = vsub.s32 0, %v149
      %v151 = vrot.slane %v146, %v150
      %v153 = vadd.f32 %v145, %v151
      %v154 = vxor.u32 %v153, 2147483648
      %v155 = vmul.f32 %v154, 1.442695
      %v156 = vpow.pop %v155
      %v157 = vadd.f32 %v156, 1.0
      %v158 = vrcp.pop %v157
      %v159 = vmul.f32 1.0, %v158
      %v160 = vmul.f32 %v153, %v159
      %161 = vst [vmem:[%s3] sm:$0xff] %v160
    $region25: #{_linear_cl.1} parent=1 // pred_fallthru
      _
    // Predicated region
    $region26: #{_linear_cl.1} parent=1 // pred_check
      _
    $region27: #{_linear_cl.1} parent=1 // pred_check_branch
      %163 = sbr.rel (0) target = $region29
    $region28: #{_linear_cl.1} parent=1 // pred_region
      _
    $region29: #{_linear_cl.1} parent=1 // pred_fallthru
      _
    // Predicated region
    $region30: #{_linear_cl.1} parent=1 // pred_check
      _
    $region31: #{_linear_cl.1} parent=1 // pred_check_branch
      %165 = sbr.rel (0) target = $region33
    $region32: #{_linear_cl.1} parent=1 // pred_region
      _
    $region33: #{_linear_cl.1} parent=1 // pred_fallthru
      _
    %166 = vsyncpa [#allocation3], 1

</llo_original>
